<compile_context>
chip_gen: v7x
topology: tpu7x:2x2x1
jax: 0.10.0
libtpu: 0.0.40
codegen_flags: <defaults>
</compile_context>

<pallas_src>
import jax
import jax.numpy as jnp
from jax.experimental import pallas as pl
from jax.experimental.pallas import tpu as pltpu

PAD = 8  # Branch.padding


def _pick_tx(Xp, B, Yp, L, itemsize, budget_bytes=2 << 20, min_steps=4):
    """Largest divisor of Xp whose output block fits `budget_bytes`, keeping at
    least `min_steps` grid steps when possible (megacore load balance)."""
    divs = [d for d in range(1, Xp + 1) if Xp % d == 0]
    fits = [d for d in divs if d * Yp * L * itemsize <= budget_bytes] or [1]
    pref = [d for d in fits if B * (Xp // d) >= min_steps]
    return max(pref) if pref else max(fits)


def make_branch(B, X, Y, Z, W, dtype=jnp.float32):
    Xp, Yp, Zp = X + PAD, Y + PAD, Z + PAD
    L = Zp * W                                   # merged lane dim of the output
    itemsize = jnp.dtype(dtype).itemsize
    TX = _pick_tx(Xp, B, Yp, L, itemsize)
    n_xt = Xp // TX

    def branch_kernel(x_ref, m_ref, b_ref, o_ref):
        # x_ref : (TX, Y, Z)    X-padded input slab (zeros for rows >= X)
        # m_ref : (Z, L)        kron(I_Z, w); zero in the Z-pad lanes
        # b_ref : (Y, L)        bias slab; zero in the Z-pad lanes
        # o_ref : (TX, Yp, L)   lane-dense output slab
        ti = pl.program_id(1)
        x0 = ti * TX

        @pl.when(x0 >= X)
        def _x_pad_tile():
            # Whole tile lies in the X padding halo: single zero store.
            o_ref[...] = jnp.zeros_like(o_ref)

        @pl.when(x0 < X)
        def _interior_tile():
            x2 = x_ref[...].reshape(TX * Y, Z)
            # (TX*Y, Z) @ (Z, Zp*W) produces the lane-dense, Z-padded slab in
            # one shot; fp32 precision to match nn.Linear numerics.
            xw = jnp.dot(
                x2,
                m_ref[...],
                preferred_element_type=jnp.float32,
                precision=jax.lax.Precision.HIGHEST,
            ).reshape(TX, Y, L)
            # Bias only where the X row is real (X-pad rows of the input are
            # zero, so the matmul term is already zero there).
            row_ok = (x0 + jax.lax.broadcasted_iota(jnp.int32, (TX, 1, 1), 0)) < X
            bias = jnp.where(row_ok, b_ref[...][None, :, :], 0.0)
            # Each output element is written exactly once.
            o_ref[:, 0:Y, :] = (xw + bias).astype(o_ref.dtype)
            o_ref[:, Y:Yp, :] = jnp.zeros((TX, PAD, L), o_ref.dtype)

    grid = (B, n_xt)

    x_spec = pl.BlockSpec((None, TX, Y, Z), lambda bb, ti: (bb, ti, 0, 0))
    m_spec = pl.BlockSpec((Z, L), lambda bb, ti: (0, 0))
    b_spec = pl.BlockSpec((Y, L), lambda bb, ti: (0, 0))
    o_spec = pl.BlockSpec((None, TX, Yp, L), lambda bb, ti: (bb, ti, 0, 0))

    call = pl.pallas_call(
        branch_kernel,
        out_shape=jax.ShapeDtypeStruct((B, Xp, Yp, L), dtype),
        grid_spec=pltpu.PrefetchScalarGridSpec(
            num_scalar_prefetch=0,
            grid=grid,
            in_specs=[x_spec, m_spec, b_spec],
            out_specs=o_spec,
        ),
        compiler_params=pltpu.CompilerParams(
            dimension_semantics=("parallel", "parallel"),
            vmem_limit_bytes=32 * 1024 * 1024,
        ),
    )

    def branch_forward(x, weight, bias):
        # x: (B, X, Y, Z, 1); weight: (W, 1); bias: (W,)
        x_sq = jnp.squeeze(x, axis=-1).astype(dtype)                  # (B, X, Y, Z)
        # Pad X up front so no clamped / wasted DMAs are issued for X-pad tiles.
        x_pad = jnp.pad(x_sq, ((0, 0), (0, PAD), (0, 0), (0, 0)))     # (B, Xp, Y, Z)
        # kron(I_Z, w): row z carries w in lanes [z*W, (z+1)*W); Z-pad lanes = 0.
        w_row = weight.reshape(1, W).astype(dtype)
        m = jnp.kron(jnp.eye(Z, dtype=dtype), w_row)                  # (Z, Z*W)
        m = jnp.pad(m, ((0, 0), (0, PAD * W)))                        # (Z, Zp*W)
        # Bias slab: bias[c] at lane z*W + c for z < Z, zero in Z-pad lanes.
        b_slab = jnp.tile(bias.astype(dtype), (Y, Z))                 # (Y, Z*W)
        b_slab = jnp.pad(b_slab, ((0, 0), (0, PAD * W)))              # (Y, Zp*W)
        out = call(x_pad, m, b_slab)                                  # (B, Xp, Yp, Zp*W)
        # Free reshape: the merged (Zp*W) lane dim is contiguous.
        return out.reshape(B, Xp, Yp, Zp, W)

    return branch_forward


def branch_reference(x, weight, bias):
    # Pure-JAX reference with identical semantics to the PyTorch module.
    y = x * weight[:, 0] + bias                      # (B, X, Y, Z, W)
    y = jnp.pad(y, ((0, 0), (0, PAD), (0, PAD), (0, PAD), (0, 0)))
    return y


if __name__ == "__main__":
    B, X, Y, Z, W = 2, 8, 8, 8, 16

    key = jax.random.PRNGKey(0)
    kx, kw, kb = jax.random.split(key, 3)
    x = jax.random.normal(kx, (B, X, Y, Z, 1), dtype=jnp.float32)
    weight = jax.random.normal(kw, (W, 1), dtype=jnp.float32) * 0.5   # fc0.weight (width, 1)
    bias = jax.random.normal(kb, (W,), dtype=jnp.float32) * 0.1       # fc0.bias   (width,)

    branch = make_branch(B, X, Y, Z, W)
    out = jax.block_until_ready(branch(x, weight, bias))

    ref = branch_reference(x, weight, bias)
    assert out.shape == (B, X + PAD, Y + PAD, Z + PAD, W), out.shape
    assert jnp.allclose(out, ref, atol=1e-4, rtol=1e-4), float(jnp.max(jnp.abs(out - ref)))

    print("KERNEL_OK")
</pallas_src>

<mosaic_0001>
module attributes {stable_mosaic.version = 11 : i64} {
  func.func @branch_kernel(%arg0: i32, %arg1: i32, %arg2: memref<1x8x8x8xf32, #tpu.memory_space<vmem>>, %arg3: memref<8x256xf32, #tpu.memory_space<vmem>>, %arg4: memref<8x256xf32, #tpu.memory_space<vmem>>, %arg5: memref<1x8x16x256xf32, #tpu.memory_space<vmem>>) attributes {dimension_semantics = [#tpu.dimension_semantics<parallel>, #tpu.dimension_semantics<parallel>], iteration_bounds = array<i64: 2, 2>, scalar_prefetch = 0 : i64, scratch_operands = 0 : i64, tpu.core_type = #tpu.core_type<tc>, window_params = [{transform_indices = @transform_0, window_bounds = array<i64: 1, 8, 8, 8>}, {pipeline_mode = #tpu.pipeline_mode<synchronous>, transform_indices = @transform_1, window_bounds = array<i64: 8, 256>}, {pipeline_mode = #tpu.pipeline_mode<synchronous>, transform_indices = @transform_2, window_bounds = array<i64: 8, 256>}, {transform_indices = @transform_3, window_bounds = array<i64: 1, 8, 16, 256>}]} {
    %c8_i32 = arith.constant 8 : i32
    %0 = arith.muli %arg1, %c8_i32 : i32
    %c8_i32_0 = arith.constant 8 : i32
    %1 = arith.cmpi sge, %0, %c8_i32_0 : i32
    %2 = arith.extui %1 : i1 to i32
    %c0_i32 = arith.constant 0 : i32
    %3 = arith.cmpi ne, %2, %c0_i32 : i32
    scf.if %3 {
      %cst = arith.constant 0.000000e+00 : f32
      %7 = vector.broadcast %cst : f32 to vector<8x16x256xf32>
      %c0 = arith.constant 0 : index
      %c0_3 = arith.constant 0 : index
      %c0_4 = arith.constant 0 : index
      %c0_5 = arith.constant 0 : index
      %8 = vector.load %arg5[%c0, %c0_3, %c0_4, %c0_5] : memref<1x8x16x256xf32, #tpu.memory_space<vmem>>, vector<1x8x16x256xf32>
      %9 = vector.shape_cast %8 : vector<1x8x16x256xf32> to vector<8x16x256xf32>
      %10 = vector.shape_cast %7 : vector<8x16x256xf32> to vector<1x8x16x256xf32>
      tpu.vector_store %arg5[%c0, %c0_3, %c0_4, %c0_5], %10 {strides = array<i32>} : memref<1x8x16x256xf32, #tpu.memory_space<vmem>>, vector<1x8x16x256xf32>,
    } else {
    }
    %c8_i32_1 = arith.constant 8 : i32
    %4 = arith.cmpi slt, %0, %c8_i32_1 : i32
    %5 = arith.extui %4 : i1 to i32
    %c0_i32_2 = arith.constant 0 : i32
    %6 = arith.cmpi ne, %5, %c0_i32_2 : i32
    scf.if %6 {
      %c0 = arith.constant 0 : index
      %c0_3 = arith.constant 0 : index
      %c0_4 = arith.constant 0 : index
      %c0_5 = arith.constant 0 : index
      %7 = vector.load %arg2[%c0, %c0_3, %c0_4, %c0_5] : memref<1x8x8x8xf32, #tpu.memory_space<vmem>>, vector<1x8x8x8xf32>
      %8 = vector.shape_cast %7 : vector<1x8x8x8xf32> to vector<8x8x8xf32>
      %9 = vector.shape_cast %8 : vector<8x8x8xf32> to vector<64x8xf32>
      %c0_6 = arith.constant 0 : index
      %c0_7 = arith.constant 0 : index
      %10 = vector.load %arg3[%c0_6, %c0_7] : memref<8x256xf32, #tpu.memory_space<vmem>>, vector<8x256xf32>
      %cst = arith.constant dense<0.000000e+00> : vector<64x256xf32>
      %11 = tpu.matmul %9, %10, %cst {dimension_numbers = #tpu.dot_dimension_numbers<[1], [0], [0], [1], [0, 0, 1, 1], [], []>, precision = #tpu.contract_precision<fp32>} : vector<64x8xf32>, vector<8x256xf32>, vector<64x256xf32> -> vector<64x256xf32>
      %12 = vector.shape_cast %11 : vector<64x256xf32> to vector<8x8x256xf32>
      %13 = tpu.iota {dimensions = array<i32: 0>} : vector<8x1x1xi32>
      %14 = vector.broadcast %0 : i32 to vector<8x1x1xi32>
      %15 = arith.addi %14, %13 : vector<8x1x1xi32>
      %c8_i32_8 = arith.constant 8 : i32
      %16 = vector.broadcast %c8_i32_8 : i32 to vector<8x1x1xi32>
      %17 = arith.cmpi slt, %15, %16 : vector<8x1x1xi32>
      %c0_9 = arith.constant 0 : index
      %c0_10 = arith.constant 0 : index
      %18 = vector.load %arg4[%c0_9, %c0_10] : memref<8x256xf32, #tpu.memory_space<vmem>>, vector<8x256xf32>
      %19 = vector.shape_cast %18 : vector<8x256xf32> to vector<1x8x256xf32>
      %cst_11 = arith.constant 0.000000e+00 : f32
      %20 = vector.shape_cast %17 : vector<8x1x1xi1> to vector<8x1x1xi1>
      %21 = vector.broadcast %20 : vector<8x1x1xi1> to vector<8x8x256xi1>
      %22 = vector.shape_cast %19 : vector<1x8x256xf32> to vector<1x8x256xf32>
      %23 = vector.broadcast %22 : vector<1x8x256xf32> to vector<8x8x256xf32>
      %24 = vector.broadcast %cst_11 : f32 to vector<8x8x256xf32>
      %25 = arith.select %21, %23, %24 : vector<8x8x256xi1>, vector<8x8x256xf32>
      %26 = arith.addf %12, %25 : vector<8x8x256xf32>
      %c0_12 = arith.constant 0 : index
      %c0_13 = arith.constant 0 : index
      %c0_14 = arith.constant 0 : index
      %c0_15 = arith.constant 0 : index
      %27 = vector.load %arg5[%c0_12, %c0_13, %c0_14, %c0_15] : memref<1x8x16x256xf32, #tpu.memory_space<vmem>>, vector<1x8x8x256xf32>
      %28 = vector.shape_cast %27 : vector<1x8x8x256xf32> to vector<8x8x256xf32>
      %29 = vector.shape_cast %26 : vector<8x8x256xf32> to vector<1x8x8x256xf32>
      tpu.vector_store %arg5[%c0_12, %c0_13, %c0_14, %c0_15], %29 {strides = array<i32>} : memref<1x8x16x256xf32, #tpu.memory_space<vmem>>, vector<1x8x8x256xf32>,
      %cst_16 = arith.constant 0.000000e+00 : f32
      %30 = vector.broadcast %cst_16 : f32 to vector<8x8x256xf32>
      %c0_17 = arith.constant 0 : index
      %c0_18 = arith.constant 0 : index
      %c8 = arith.constant 8 : index
      %c0_19 = arith.constant 0 : index
      %31 = vector.load %arg5[%c0_17, %c0_18, %c8, %c0_19] : memref<1x8x16x256xf32, #tpu.memory_space<vmem>>, vector<1x8x8x256xf32>
      %32 = vector.shape_cast %31 : vector<1x8x8x256xf32> to vector<8x8x256xf32>
      %33 = vector.shape_cast %30 : vector<8x8x256xf32> to vector<1x8x8x256xf32>
      tpu.vector_store %arg5[%c0_17, %c0_18, %c8, %c0_19], %33 {strides = array<i32>} : memref<1x8x16x256xf32, #tpu.memory_space<vmem>>, vector<1x8x8x256xf32>,
    } else {
    }
    return
  }
  func.func @transform_0(%arg0: i32, %arg1: i32) -> (i32, i32, i32, i32) {
    %c0_i32 = arith.constant 0 : i32
    %c0_i32_0 = arith.constant 0 : i32
    %c0_i32_1 = arith.constant 0 : i32
    return %arg0, %arg1, %c0_i32, %c0_i32_0 : i32, i32, i32, i32
  }
  func.func @transform_1(%arg0: i32, %arg1: i32) -> (i32, i32) {
    %c0_i32 = arith.constant 0 : i32
    %c0_i32_0 = arith.constant 0 : i32
    %c0_i32_1 = arith.constant 0 : i32
    return %c0_i32, %c0_i32_0 : i32, i32
  }
  func.func @transform_2(%arg0: i32, %arg1: i32) -> (i32, i32) {
    %c0_i32 = arith.constant 0 : i32
    %c0_i32_0 = arith.constant 0 : i32
    %c0_i32_1 = arith.constant 0 : i32
    return %c0_i32, %c0_i32_0 : i32, i32
  }
  func.func @transform_3(%arg0: i32, %arg1: i32) -> (i32, i32, i32, i32) {
    %c0_i32 = arith.constant 0 : i32
    %c0_i32_0 = arith.constant 0 : i32
    %c0_i32_1 = arith.constant 0 : i32
    return %arg0, %arg1, %c0_i32, %c0_i32_0 : i32, i32, i32, i32
  }
}

</mosaic_0001>

<llo_original>
// kernel: tpu_custom_call.1
$region0: #{tpu_custom_call.1}
  #allocation0 [shape = 'u32[]', space=smem, size = 0x4, offset = 0x4, fixed_abs, tag = 'smem constant byte address 0x4 - core index']
  #allocation1 [shape = 'u32[144,128]{1,0:T(1,128)}', space=vmem, size = 0x12000, scoped, tag = 'internal scratch']
  %s0 = inlined_call_operand.vmem [shape: f32[2,16,8,8], index: 0, kind: input, shape index: {}]
  %s1 = inlined_call_operand.vmem [shape: f32[8,256], index: 1, kind: input, shape index: {}]
  %s2 = inlined_call_operand.vmem [shape: f32[8,256], index: 2, kind: input, shape index: {}]
  %s3 = inlined_call_operand.hbm [shape: f32[2,16,16,256], index: 3, kind: output, shape index: {}]
  %s4 = sld [smem:[#allocation0]]
  $region53: #{tpu_custom_call.1} parent=0
    _
  %s6 = ssub.s32 1, %s4
  %s7 = scalar_select 0, %s6, %s4
  $region1: #{tpu_custom_call.1} parent=0
    #allocation2 [shape = 'u8[262144]{0}', space=vmem, size = 0x40000, scoped, tag = 'output window, operand 0']
    #allocation3 [shape = 's32[2]{0}', space=sflag, size = 0x8, scoped, tag = 'scoped memory for tpu_custom_call.1']
    %8 = vsyncpa [#allocation3], 0
    %s9 = scalar_lea.sflag [#allocation3], 1
    %10 = vsyncpa %s9, 0
    loop: start=0, step=1, limit=6
    $region2: #{tpu_custom_call.1} parent=1 // loop_pre_header
      _
    $region3: #{tpu_custom_call.1} parent=1 // loop_header
      %s12 = sphi 0, %s16
      %p13 = scmp.ge.s32.totalorder %s12, 6
      %s19 = sphi 0, %s31
      %s20 = sphi 0, %s27
      %s21 = sphi 0, %s19
      %s22 = sphi 0, %s20
      %s23 = sphi 0, %s21
      %s24 = sphi 0, %s22
      %s36 = sphi 0, %s38
      %s39 = sphi 0, %s36
      %s40 = sphi 0, %s39
      %s56 = sphi 0, %s40
      %s60 = sphi 0, %s60
      %s62 = sphi 0, %s60
      %s63 = sphi 0, %s62
      %s77 = sphi 0, %s63
      %s81 = sphi 0, %s81
      %s83 = sphi 0, %s81
      %s84 = sphi 0, %s83
      %s98 = sphi 0, %s84
      %s106 = sphi 0, %s108
      %s109 = sphi 0, %s106
      %s110 = sphi 0, %s109
      %s126 = sphi 0, %s110
    $region4: #{tpu_custom_call.1} parent=1 // loop_header_branch
      %15 = sbr.rel (%p13) target = $region8
    $region5: #{tpu_custom_call.1} parent=1 // loop_body
      %s17 = ssub.s32 %s12, 1
      %s18 = ssub.s32 %s12, 2
      %s25 = sadd.s32 1, %s20
      %p26 = scmp.ge.s32.totalorder %s25, 2
      %s27 = scalar_select %p26, 0, %s25
      %s28 = sadd.s32 1, %s19
      %s29 = scalar_select %p26, %s28, %s19
      %p30 = scmp.ge.s32.totalorder %s29, 2
      %s31 = scalar_select %p30, 0, %s29
      %s32 = ssub.s32 %s19, %s31
      %s33 = ssub.s32 %s20, %s27
      %s34 = sor.u32 %s32, %s33
      %p35 = scmp.eq.s32.totalorder %s34, 0
      %s37 = sadd.s32 %s36, 1
      %s38 = scalar_select %p35, %s36, %s37
      %p41 = pneg %p35
      %p42 = scmp.eq.s32.totalorder %s12, 3
      %p43 = por %p41, %p42
      %p44 = scmp.ne.s32.totalorder %s36, %s39
      %p45 = scmp.eq.s32.totalorder %s12, 0
      %p46 = por %p44, %p45
      %p47 = scmp.ne.s32.totalorder %s36, %s39
      %p48 = scmp.eq.s32.totalorder %s17, 3
      %p49 = por %p47, %p48
      %p50 = scmp.ne.s32.totalorder %s39, %s40
      %p51 = scmp.eq.s32.totalorder %s17, 0
      %p52 = por %p50, %p51
      %p53 = scmp.ne.s32.totalorder %s39, %s40
      %p54 = scmp.eq.s32.totalorder %s18, 3
      %p55 = por %p53, %p54
      %p57 = scmp.ne.s32.totalorder %s40, %s56
      %p58 = scmp.eq.s32.totalorder %s18, 0
      %p59 = por %p57, %p58
      %s61 = sadd.s32 %s60, 1
      %p64 = scmp.eq.s32.totalorder %s12, 3
      %p65 = scmp.ne.s32.totalorder %s60, %s62
      %p66 = scmp.eq.s32.totalorder %s12, 0
      %p67 = por %p65, %p66
      %p68 = scmp.ne.s32.totalorder %s60, %s62
      %p69 = scmp.eq.s32.totalorder %s17, 3
      %p70 = por %p68, %p69
      %p71 = scmp.ne.s32.totalorder %s62, %s63
      %p72 = scmp.eq.s32.totalorder %s17, 0
      %p73 = por %p71, %p72
      %p74 = scmp.ne.s32.totalorder %s62, %s63
      %p75 = scmp.eq.s32.totalorder %s18, 3
      %p76 = por %p74, %p75
      %p78 = scmp.ne.s32.totalorder %s63, %s77
      %p79 = scmp.eq.s32.totalorder %s18, 0
      %p80 = por %p78, %p79
      %s82 = sadd.s32 %s81, 1
      %p85 = scmp.eq.s32.totalorder %s12, 3
      %p86 = scmp.ne.s32.totalorder %s81, %s83
      %p87 = scmp.eq.s32.totalorder %s12, 0
      %p88 = por %p86, %p87
      %p89 = scmp.ne.s32.totalorder %s81, %s83
      %p90 = scmp.eq.s32.totalorder %s17, 3
      %p91 = por %p89, %p90
      %p92 = scmp.ne.s32.totalorder %s83, %s84
      %p93 = scmp.eq.s32.totalorder %s17, 0
      %p94 = por %p92, %p93
      %p95 = scmp.ne.s32.totalorder %s83, %s84
      %p96 = scmp.eq.s32.totalorder %s18, 3
      %p97 = por %p95, %p96
      %p99 = scmp.ne.s32.totalorder %s84, %s98
      %p100 = scmp.eq.s32.totalorder %s18, 0
      %p101 = por %p99, %p100
      %s102 = ssub.s32 %s19, %s31
      %s103 = ssub.s32 %s20, %s27
      %s104 = sor.u32 %s102, %s103
      %p105 = scmp.eq.s32.totalorder %s104, 0
      %s107 = sadd.s32 %s106, 1
      %s108 = scalar_select %p105, %s106, %s107
      %p111 = pneg %p105
      %p112 = scmp.eq.s32.totalorder %s12, 3
      %p113 = por %p111, %p112
      %p114 = scmp.ne.s32.totalorder %s106, %s109
      %p115 = scmp.eq.s32.totalorder %s12, 0
      %p116 = por %p114, %p115
      %p117 = scmp.ne.s32.totalorder %s106, %s109
      %p118 = scmp.eq.s32.totalorder %s17, 3
      %p119 = por %p117, %p118
      %p120 = scmp.ne.s32.totalorder %s109, %s110
      %p121 = scmp.eq.s32.totalorder %s17, 0
      %p122 = por %p120, %p121
      %p123 = scmp.ne.s32.totalorder %s109, %s110
      %p124 = scmp.eq.s32.totalorder %s18, 3
      %p125 = por %p123, %p124
      %p127 = scmp.ne.s32.totalorder %s110, %s126
      %p128 = scmp.eq.s32.totalorder %s18, 0
      %p129 = por %p127, %p128
      %p130 = scmp.le.s32.totalorder 1, %s12
      %p131 = scmp.lt.s32.totalorder %s12, 5
      %p132 = pnand %p130, %p131
      %p133 = pneg %p132
      // Predicated region
      $region9: #{tpu_custom_call.1} parent=5 // pred_check
        _
      $region10: #{tpu_custom_call.1} parent=5 // pred_check_branch
        %135 = sbr.rel (%p132) target = $region12
      $region11: #{tpu_custom_call.1} parent=5 // pred_region
        %s136 = ssub.s32 %s12, 1
        // Predicated region
        $region13: #{tpu_custom_call.1} parent=11 // pred_check
          %p137 = pneg %p73
        $region14: #{tpu_custom_call.1} parent=11 // pred_check_branch
          %139 = sbr.rel (%p137) target = $region16
        $region15: #{tpu_custom_call.1} parent=11 // pred_region
          _
        $region16: #{tpu_custom_call.1} parent=11 // pred_fallthru
          _
        // Predicated region
        $region17: #{tpu_custom_call.1} parent=11 // pred_check
          %p140 = pneg %p94
        $region18: #{tpu_custom_call.1} parent=11 // pred_check_branch
          %142 = sbr.rel (%p140) target = $region20
        $region19: #{tpu_custom_call.1} parent=11 // pred_region
          _
        $region20: #{tpu_custom_call.1} parent=11 // pred_fallthru
          _
      $region12: #{tpu_custom_call.1} parent=5 // pred_fallthru
        _
      %p143 = scmp.lt.s32.totalorder %s12, 4
      // Predicated region
      $region21: #{tpu_custom_call.1} parent=5 // pred_check
        %p144 = pneg %p143
      $region22: #{tpu_custom_call.1} parent=5 // pred_check_branch
        %146 = sbr.rel (%p144) target = $region24
      $region23: #{tpu_custom_call.1} parent=5 // pred_region
        // Predicated region
        $region25: #{tpu_custom_call.1} parent=23 // pred_check
          %p147 = pneg %p46
        $region26: #{tpu_custom_call.1} parent=23 // pred_check_branch
          %149 = sbr.rel (%p147) target = $region28
        $region27: #{tpu_custom_call.1} parent=23 // pred_region
          %s150 = smul.u32 8, %s20
          %p151 = scmp.lt.s32.totalorder %s19, 1
          %s152 = scalar_select %p151, %s19, 1
          %p153 = scmp.lt.s32.totalorder %s150, 15
          %s154 = scalar_select %p153, %s150, 15
          %s155 = smul.addr %s152, 16
          %s156 = sadd.s32 %s154, %s155
          %s157 = smul.addr %s156, 8
          %s158 = scalar_lea.vmem %s0, %s157
          %s159 = smul.u32 8, %s20
        $region28: #{tpu_custom_call.1} parent=23 // pred_fallthru
          _
      $region24: #{tpu_custom_call.1} parent=5 // pred_fallthru
        _
      %p160 = scmp.le.s32.totalorder 1, %s12
      %p161 = scmp.lt.s32.totalorder %s12, 5
      %p162 = pnand %p160, %p161
      %p163 = pneg %p162
      // Predicated region
      $region29: #{tpu_custom_call.1} parent=5 // pred_check
        _
      $region30: #{tpu_custom_call.1} parent=5 // pred_check_branch
        %165 = sbr.rel (%p162) target = $region32
      $region31: #{tpu_custom_call.1} parent=5 // pred_region
        %s166 = ssub.s32 %s12, 1
        %s167 = smul.u32 8, %s22
        %p168 = scmp.lt.s32.totalorder %s21, 1
        %s169 = scalar_select %p168, %s21, 1
        %p170 = scmp.lt.s32.totalorder %s167, 15
        %s171 = scalar_select %p170, %s167, 15
        %s172 = smul.addr %s169, 16
        %s173 = sadd.s32 %s171, %s172
        %s174 = smul.addr %s173, 8
        %s175 = scalar_lea.vmem %s0, %s174
        %p176 = pneg %p52
        %p177 = pneg %p49
        %p178 = pneg %p73
        %p179 = pneg %p70
        %p180 = pneg %p94
        %p181 = pneg %p91
        %p182 = pneg %p122
        %p183 = pneg %p119
        %s184 = sand.u32 %s109, 1
        %s185 = scalar_lea.sflag [#allocation3], %s184
        %s186 = sand.u32 %s109, 1
        %s187 = smul.addr %s186, 256
        %s188 = scalar_lea.vmem [#allocation2], %s187
        %s189 = smul.u32 8, %s22
        %p190 = scmp.lt.s32.totalorder %s21, 1
        %s191 = scalar_select %p190, %s21, 1
        %p192 = scmp.lt.s32.totalorder %s189, 15
        %s193 = scalar_select %p192, %s189, 15
        %s194 = smul.addr %s191, 16
        %s195 = sadd.s32 %s193, %s194
        %s196 = smul.addr %s195, 8
        %s197 = scalar_lea.vmem %s0, %s196
        %s198 = smul.u32 8, %s22
        %s199 = smul.u32 8, %s22
        %s200 = smul.u32 %s22, 8
        %p201 = scmp.ge.s32.totalorder %s200, 8
        // Predicated region
        $region33: #{tpu_custom_call.1} parent=31 // pred_check
          %p202 = pneg %p201
        $region34: #{tpu_custom_call.1} parent=31 // pred_check_branch
          %204 = sbr.rel (%p202) target = $region36
        $region35: #{tpu_custom_call.1} parent=31 // pred_region
          %205 = vst [vmem:[%s188] sm:$0xff] 0.0
          %206 = vst [vmem:[%s188 + $0x8] sm:$0xff] 0.0
          %207 = vst [vmem:[%s188 + $0x10] sm:$0xff] 0.0
          %208 = vst [vmem:[%s188 + $0x18] sm:$0xff] 0.0
          %209 = vst [vmem:[%s188 + $0x20] sm:$0xff] 0.0
          %210 = vst [vmem:[%s188 + $0x28] sm:$0xff] 0.0
          %211 = vst [vmem:[%s188 + $0x30] sm:$0xff] 0.0
          %212 = vst [vmem:[%s188 + $0x38] sm:$0xff] 0.0
          %213 = vst [vmem:[%s188 + $0x40] sm:$0xff] 0.0
          %214 = vst [vmem:[%s188 + $0x48] sm:$0xff] 0.0
          %215 = vst [vmem:[%s188 + $0x50] sm:$0xff] 0.0
          %216 = vst [vmem:[%s188 + $0x58] sm:$0xff] 0.0
          %217 = vst [vmem:[%s188 + $0x60] sm:$0xff] 0.0
          %218 = vst [vmem:[%s188 + $0x68] sm:$0xff] 0.0
          %219 = vst [vmem:[%s188 + $0x70] sm:$0xff] 0.0
          %220 = vst [vmem:[%s188 + $0x78] sm:$0xff] 0.0
          %221 = vst [vmem:[%s188 + $0x80] sm:$0xff] 0.0
          %222 = vst [vmem:[%s188 + $0x88] sm:$0xff] 0.0
          %223 = vst [vmem:[%s188 + $0x90] sm:$0xff] 0.0
          %224 = vst [vmem:[%s188 + $0x98] sm:$0xff] 0.0
          %225 = vst [vmem:[%s188 + $0xa0] sm:$0xff] 0.0
          %226 = vst [vmem:[%s188 + $0xa8] sm:$0xff] 0.0
          %227 = vst [vmem:[%s188 + $0xb0] sm:$0xff] 0.0
          %228 = vst [vmem:[%s188 + $0xb8] sm:$0xff] 0.0
          %229 = vst [vmem:[%s188 + $0xc0] sm:$0xff] 0.0
          %230 = vst [vmem:[%s188 + $0xc8] sm:$0xff] 0.0
          %231 = vst [vmem:[%s188 + $0xd0] sm:$0xff] 0.0
          %232 = vst [vmem:[%s188 + $0xd8] sm:$0xff] 0.0
          %233 = vst [vmem:[%s188 + $0xe0] sm:$0xff] 0.0
          %234 = vst [vmem:[%s188 + $0xe8] sm:$0xff] 0.0
          %235 = vst [vmem:[%s188 + $0xf0] sm:$0xff] 0.0
          %236 = vst [vmem:[%s188 + $0xf8] sm:$0xff] 0.0
        $region36: #{tpu_custom_call.1} parent=31 // pred_fallthru
          _
        %p237 = scmp.lt.s32.totalorder %s200, 8
        // Predicated region
        $region37: #{tpu_custom_call.1} parent=31 // pred_check
          %p238 = pneg %p237
        $region38: #{tpu_custom_call.1} parent=31 // pred_check_branch
          %240 = sbr.rel (%p238) target = $region40
        $region39: #{tpu_custom_call.1} parent=31 // pred_region
          %v241 = vld [vmem:[%s197] sm:$0xff]
          %v242 = vld [vmem:[%s197 + $0x8] sm:$0xff]
          %v243 = vld [vmem:[%s197 + $0x10] sm:$0xff]
          %v244 = vld [vmem:[%s197 + $0x18] sm:$0xff]
          %v245 = vld [vmem:[%s197 + $0x20] sm:$0xff]
          %v246 = vld [vmem:[%s197 + $0x28] sm:$0xff]
          %v247 = vld [vmem:[%s197 + $0x30] sm:$0xff]
          %v248 = vld [vmem:[%s197 + $0x38] sm:$0xff]
          %v249 = vld [vmem:[%s1] sm:$0xff]
          %v250 = vld [vmem:[%s1 + $0x8] sm:$0xff]
          %vm251 = vcmask 64512
          %v253 = vsel %vm251, %v241, 0
          %v256 = vsel %vm251, %v242, 0
          %v259 = vsel %vm251, %v243, 0
          %v262 = vsel %vm251, %v244, 0
          %v265 = vsel %vm251, %v245, 0
          %v268 = vsel %vm251, %v246, 0
          %v271 = vsel %vm251, %v247, 0
          %v274 = vsel %vm251, %v248, 0
          %v276 = vand.u32 %v250, 4294901760
          %277 = vmatprep.subr.mxu0 %v276
          %v278 = vand.u32 %v249, 4294901760
          %279 = vmatpush1.msra.mxu0 %v278
          %280 = vmatprep.subr.mxu0 0.0
          %281 = vmatpush1.msra.mxu0 0.0
          %282 = vmatprep.subr.mxu0 0.0
          %283 = vmatpush1.msra.mxu0 0.0
          %284 = vmatprep.subr.mxu0 0.0
          %285 = vmatpush1.msra.mxu0 0.0
          %286 = vmatprep.subr.mxu0 0.0
          %287 = vmatpush1.msra.mxu0 0.0
          %288 = vmatprep.subr.mxu0 0.0
          %289 = vmatpush1.msra.mxu0 0.0
          %290 = vmatprep.subr.mxu0 0.0
          %291 = vmatpush1.msra.mxu0 0.0
          %292 = vmatprep.subr.mxu0 0.0
          %293 = vmatpush1.msra.mxu0 0.0
          %294 = vmatprep.subr.mxu0 0.0
          %295 = vmatpush1.msra.mxu0 0.0
          %296 = vmatprep.subr.mxu0 0.0
          %297 = vmatpush1.msra.mxu0 0.0
          %298 = vmatprep.subr.mxu0 0.0
          %299 = vmatpush1.msra.mxu0 0.0
          %300 = vmatprep.subr.mxu0 0.0
          %301 = vmatpush1.msra.mxu0 0.0
          %302 = vmatprep.subr.mxu0 0.0
          %303 = vmatpush1.msra.mxu0 0.0
          %304 = vmatprep.subr.mxu0 0.0
          %305 = vmatpush1.msra.mxu0 0.0
          %306 = vmatprep.subr.mxu0 0.0
          %307 = vmatpush1.msra.mxu0 0.0
          %308 = vmatprep.subr.mxu0 0.0
          %309 = vmatpush1.msra.mxu0 0.0
          %310 = vmatprep.subr.mxu0 0.0
          %311 = vmatpush1.msra.mxu0 0.0
          %312 = vmatprep.subr.mxu0 0.0
          %313 = vmatpush1.msra.mxu0 0.0
          %314 = vmatprep.subr.mxu0 0.0
          %315 = vmatpush1.msra.mxu0 0.0
          %316 = vmatprep.subr.mxu0 0.0
          %317 = vmatpush1.msra.mxu0 0.0
          %318 = vmatprep.subr.mxu0 0.0
          %319 = vmatpush1.msra.mxu0 0.0
          %320 = vmatprep.subr.mxu0 0.0
          %321 = vmatpush1.msra.mxu0 0.0
          %322 = vmatprep.subr.mxu0 0.0
          %323 = vmatpush1.msra.mxu0 0.0
          %324 = vmatprep.subr.mxu0 0.0
          %325 = vmatpush1.msra.mxu0 0.0
          %326 = vmatprep.subr.mxu0 0.0
          %327 = vmatpush1.msra.mxu0 0.0
          %328 = vmatprep.subr.mxu0 0.0
          %329 = vmatpush1.msra.mxu0 0.0
          %330 = vmatprep.subr.mxu0 0.0
          %331 = vmatpush1.msra.mxu0 0.0
          %332 = vmatprep.subr.mxu0 0.0
          %333 = vmatpush1.msra.mxu0 0.0
          %334 = vmatprep.subr.mxu0 0.0
          %335 = vmatpush1.msra.mxu0 0.0
          %336 = vmatprep.subr.mxu0 0.0
          %337 = vmatpush1.msra.mxu0 0.0
          %338 = vmatprep.subr.mxu0 0.0
          %339 = vmatpush1.msra.mxu0 0.0
          %340 = vmatprep.subr.mxu0 0.0
          %341 = vmatpush1.msra.mxu0 0.0
          %342 = vmatprep.mubr.f32.mxu0 0.0
          %v343 = vand.u32 %v253, 4294901760
          %v344 = vsub.f32 %v253, %v343
          %v345 = vand.u32 %v344, 4294901760
          %v346 = vsub.f32 %v344, %v345
          %v347 = vand.u32 %v346, 4294901760
          %348 = vmatmul.mubr.f32.gmra.mrb[0].mxu0 %v347
          %v349 = vpop.f32.mrb[0].mxu0
          %v350 = vadd.f32 0.0, %v349
          %v351 = vpop.f32.mrb[0].mxu0
          %v352 = vadd.f32 0.0, %v351
          %353 = vmatprep.mubr.f32.mxu0 0.0
          %v354 = vand.u32 %v256, 4294901760
          %v355 = vsub.f32 %v256, %v354
          %v356 = vand.u32 %v355, 4294901760
          %v357 = vsub.f32 %v355, %v356
          %v358 = vand.u32 %v357, 4294901760
          %359 = vmatmul.mubr.f32.gmra.mrb[0].mxu0 %v358
          %v360 = vpop.f32.mrb[0].mxu0
          %v361 = vadd.f32 0.0, %v360
          %v362 = vpop.f32.mrb[0].mxu0
          %v363 = vadd.f32 0.0, %v362
          %364 = vmatprep.mubr.f32.mxu0 0.0
          %v365 = vand.u32 %v259, 4294901760
          %v366 = vsub.f32 %v259, %v365
          %v367 = vand.u32 %v366, 4294901760
          %v368 = vsub.f32 %v366, %v367
          %v369 = vand.u32 %v368, 4294901760
          %370 = vmatmul.mubr.f32.gmra.mrb[0].mxu0 %v369
          %v371 = vpop.f32.mrb[0].mxu0
          %v372 = vadd.f32 0.0, %v371
          %v373 = vpop.f32.mrb[0].mxu0
          %v374 = vadd.f32 0.0, %v373
          %375 = vmatprep.mubr.f32.mxu0 0.0
          %v376 = vand.u32 %v262, 4294901760
          %v377 = vsub.f32 %v262, %v376
          %v378 = vand.u32 %v377, 4294901760
          %v379 = vsub.f32 %v377, %v378
          %v380 = vand.u32 %v379, 4294901760
          %381 = vmatmul.mubr.f32.gmra.mrb[0].mxu0 %v380
          %v382 = vpop.f32.mrb[0].mxu0
          %v383 = vadd.f32 0.0, %v382
          %v384 = vpop.f32.mrb[0].mxu0
          %v385 = vadd.f32 0.0, %v384
          %386 = vmatprep.mubr.f32.mxu0 0.0
          %v387 = vand.u32 %v265, 4294901760
          %v388 = vsub.f32 %v265, %v387
          %v389 = vand.u32 %v388, 4294901760
          %v390 = vsub.f32 %v388, %v389
          %v391 = vand.u32 %v390, 4294901760
          %392 = vmatmul.mubr.f32.gmra.mrb[0].mxu0 %v391
          %v393 = vpop.f32.mrb[0].mxu0
          %v394 = vadd.f32 0.0, %v393
          %v395 = vpop.f32.mrb[0].mxu0
          %v396 = vadd.f32 0.0, %v395
          %397 = vmatprep.mubr.f32.mxu0 0.0
          %v398 = vand.u32 %v268, 4294901760
          %v399 = vsub.f32 %v268, %v398
          %v400 = vand.u32 %v399, 4294901760
          %v401 = vsub.f32 %v399, %v400
          %v402 = vand.u32 %v401, 4294901760
          %403 = vmatmul.mubr.f32.gmra.mrb[0].mxu0 %v402
          %v404 = vpop.f32.mrb[0].mxu0
          %v405 = vadd.f32 0.0, %v404
          %v406 = vpop.f32.mrb[0].mxu0
          %v407 = vadd.f32 0.0, %v406
          %408 = vmatprep.mubr.f32.mxu0 0.0
          %v409 = vand.u32 %v271, 4294901760
          %v410 = vsub.f32 %v271, %v409
          %v411 = vand.u32 %v410, 4294901760
          %v412 = vsub.f32 %v410, %v411
          %v413 = vand.u32 %v412, 4294901760
          %414 = vmatmul.mubr.f32.gmra.mrb[0].mxu0 %v413
          %v415 = vpop.f32.mrb[0].mxu0
          %v416 = vadd.f32 0.0, %v415
          %v417 = vpop.f32.mrb[0].mxu0
          %v418 = vadd.f32 0.0, %v417
          %419 = vmatprep.mubr.f32.mxu0 0.0
          %v420 = vand.u32 %v274, 4294901760
          %v421 = vsub.f32 %v274, %v420
          %v422 = vand.u32 %v421, 4294901760
          %v423 = vsub.f32 %v421, %v422
          %v424 = vand.u32 %v423, 4294901760
          %425 = vmatmul.mubr.f32.gmra.mrb[0].mxu0 %v424
          %v426 = vpop.f32.mrb[0].mxu0
          %v427 = vadd.f32 0.0, %v426
          %v428 = vpop.f32.mrb[0].mxu0
          %v429 = vadd.f32 0.0, %v428
          %430 = vdwg.mxu0
          %v431 = vand.u32 %v250, 4294901760
          %v432 = vsub.f32 %v250, %v431
          %v433 = vand.u32 %v432, 4294901760
          %v434 = vsub.f32 %v432, %v433
          %v435 = vand.u32 %v434, 4294901760
          %436 = vmatprep.subr.mxu0 %v435
          %v437 = vand.u32 %v249, 4294901760
          %v438 = vsub.f32 %v249, %v437
          %v439 = vand.u32 %v438, 4294901760
          %v440 = vsub.f32 %v438, %v439
          %v441 = vand.u32 %v440, 4294901760
          %442 = vmatpush1.msra.mxu0 %v441
          %443 = vmatprep.subr.mxu0 0.0
          %444 = vmatpush1.msra.mxu0 0.0
          %445 = vmatprep.subr.mxu0 0.0
          %446 = vmatpush1.msra.mxu0 0.0
          %447 = vmatprep.subr.mxu0 0.0
          %448 = vmatpush1.msra.mxu0 0.0
          %449 = vmatprep.subr.mxu0 0.0
          %450 = vmatpush1.msra.mxu0 0.0
          %451 = vmatprep.subr.mxu0 0.0
          %452 = vmatpush1.msra.mxu0 0.0
          %453 = vmatprep.subr.mxu0 0.0
          %454 = vmatpush1.msra.mxu0 0.0
          %455 = vmatprep.subr.mxu0 0.0
          %456 = vmatpush1.msra.mxu0 0.0
          %457 = vmatprep.subr.mxu0 0.0
          %458 = vmatpush1.msra.mxu0 0.0
          %459 = vmatprep.subr.mxu0 0.0
          %460 = vmatpush1.msra.mxu0 0.0
          %461 = vmatprep.subr.mxu0 0.0
          %462 = vmatpush1.msra.mxu0 0.0
          %463 = vmatprep.subr.mxu0 0.0
          %464 = vmatpush1.msra.mxu0 0.0
          %465 = vmatprep.subr.mxu0 0.0
          %466 = vmatpush1.msra.mxu0 0.0
          %467 = vmatprep.subr.mxu0 0.0
          %468 = vmatpush1.msra.mxu0 0.0
          %469 = vmatprep.subr.mxu0 0.0
          %470 = vmatpush1.msra.mxu0 0.0
          %471 = vmatprep.subr.mxu0 0.0
          %472 = vmatpush1.msra.mxu0 0.0
          %473 = vmatprep.subr.mxu0 0.0
          %474 = vmatpush1.msra.mxu0 0.0
          %475 = vmatprep.subr.mxu0 0.0
          %476 = vmatpush1.msra.mxu0 0.0
          %477 = vmatprep.subr.mxu0 0.0
          %478 = vmatpush1.msra.mxu0 0.0
          %479 = vmatprep.subr.mxu0 0.0
          %480 = vmatpush1.msra.mxu0 0.0
          %481 = vmatprep.subr.mxu0 0.0
          %482 = vmatpush1.msra.mxu0 0.0
          %483 = vmatprep.subr.mxu0 0.0
          %484 = vmatpush1.msra.mxu0 0.0
          %485 = vmatprep.subr.mxu0 0.0
          %486 = vmatpush1.msra.mxu0 0.0
          %487 = vmatprep.subr.mxu0 0.0
          %488 = vmatpush1.msra.mxu0 0.0
          %489 = vmatprep.subr.mxu0 0.0
          %490 = vmatpush1.msra.mxu0 0.0
          %491 = vmatprep.subr.mxu0 0.0
          %492 = vmatpush1.msra.mxu0 0.0
          %493 = vmatprep.subr.mxu0 0.0
          %494 = vmatpush1.msra.mxu0 0.0
          %495 = vmatprep.subr.mxu0 0.0
          %496 = vmatpush1.msra.mxu0 0.0
          %497 = vmatprep.subr.mxu0 0.0
          %498 = vmatpush1.msra.mxu0 0.0
          %499 = vmatprep.subr.mxu0 0.0
          %500 = vmatpush1.msra.mxu0 0.0
          %501 = vmatprep.subr.mxu0 0.0
          %502 = vmatpush1.msra.mxu0 0.0
          %503 = vmatprep.subr.mxu0 0.0
          %504 = vmatpush1.msra.mxu0 0.0
          %505 = vmatprep.mubr.f32.mxu0 0.0
          %v506 = vand.u32 %v253, 4294901760
          %507 = vmatmul.mubr.f32.gmra.mrb[0].mxu0 %v506
          %v508 = vpop.f32.mrb[0].mxu0
          %v509 = vadd.f32 %v350, %v508
          %v510 = vpop.f32.mrb[0].mxu0
          %v511 = vadd.f32 %v352, %v510
          %512 = vmatprep.mubr.f32.mxu0 0.0
          %v513 = vand.u32 %v256, 4294901760
          %514 = vmatmul.mubr.f32.gmra.mrb[0].mxu0 %v513
          %v515 = vpop.f32.mrb[0].mxu0
          %v516 = vadd.f32 %v361, %v515
          %v517 = vpop.f32.mrb[0].mxu0
          %v518 = vadd.f32 %v363, %v517
          %519 = vmatprep.mubr.f32.mxu0 0.0
          %v520 = vand.u32 %v259, 4294901760
          %521 = vmatmul.mubr.f32.gmra.mrb[0].mxu0 %v520
          %v522 = vpop.f32.mrb[0].mxu0
          %v523 = vadd.f32 %v372, %v522
          %v524 = vpop.f32.mrb[0].mxu0
          %v525 = vadd.f32 %v374, %v524
          %526 = vmatprep.mubr.f32.mxu0 0.0
          %v527 = vand.u32 %v262, 4294901760
          %528 = vmatmul.mubr.f32.gmra.mrb[0].mxu0 %v527
          %v529 = vpop.f32.mrb[0].mxu0
          %v530 = vadd.f32 %v383, %v529
          %v531 = vpop.f32.mrb[0].mxu0
          %v532 = vadd.f32 %v385, %v531
          %533 = vmatprep.mubr.f32.mxu0 0.0
          %v534 = vand.u32 %v265, 4294901760
          %535 = vmatmul.mubr.f32.gmra.mrb[0].mxu0 %v534
          %v536 = vpop.f32.mrb[0].mxu0
          %v537 = vadd.f32 %v394, %v536
          %v538 = vpop.f32.mrb[0].mxu0
          %v539 = vadd.f32 %v396, %v538
          %540 = vmatprep.mubr.f32.mxu0 0.0
          %v541 = vand.u32 %v268, 4294901760
          %542 = vmatmul.mubr.f32.gmra.mrb[0].mxu0 %v541
          %v543 = vpop.f32.mrb[0].mxu0
          %v544 = vadd.f32 %v405, %v543
          %v545 = vpop.f32.mrb[0].mxu0
          %v546 = vadd.f32 %v407, %v545
          %547 = vmatprep.mubr.f32.mxu0 0.0
          %v548 = vand.u32 %v271, 4294901760
          %549 = vmatmul.mubr.f32.gmra.mrb[0].mxu0 %v548
          %v550 = vpop.f32.mrb[0].mxu0
          %v551 = vadd.f32 %v416, %v550
          %v552 = vpop.f32.mrb[0].mxu0
          %v553 = vadd.f32 %v418, %v552
          %554 = vmatprep.mubr.f32.mxu0 0.0
          %v555 = vand.u32 %v274, 4294901760
          %556 = vmatmul.mubr.f32.gmra.mrb[0].mxu0 %v555
          %v557 = vpop.f32.mrb[0].mxu0
          %v558 = vadd.f32 %v427, %v557
          %v559 = vpop.f32.mrb[0].mxu0
          %v560 = vadd.f32 %v429, %v559
          %561 = vdwg.mxu0
          %v562 = vand.u32 %v250, 4294901760
          %v563 = vsub.f32 %v250, %v562
          %564 = vmatprep.subr.mxu0 %v563
          %v565 = vand.u32 %v249, 4294901760
          %v566 = vsub.f32 %v249, %v565
          %567 = vmatpush1.msra.mxu0 %v566
          %568 = vmatprep.subr.mxu0 0.0
          %569 = vmatpush1.msra.mxu0 0.0
          %570 = vmatprep.subr.mxu0 0.0
          %571 = vmatpush1.msra.mxu0 0.0
          %572 = vmatprep.subr.mxu0 0.0
          %573 = vmatpush1.msra.mxu0 0.0
          %574 = vmatprep.subr.mxu0 0.0
          %575 = vmatpush1.msra.mxu0 0.0
          %576 = vmatprep.subr.mxu0 0.0
          %577 = vmatpush1.msra.mxu0 0.0
          %578 = vmatprep.subr.mxu0 0.0
          %579 = vmatpush1.msra.mxu0 0.0
          %580 = vmatprep.subr.mxu0 0.0
          %581 = vmatpush1.msra.mxu0 0.0
          %582 = vmatprep.subr.mxu0 0.0
          %583 = vmatpush1.msra.mxu0 0.0
          %584 = vmatprep.subr.mxu0 0.0
          %585 = vmatpush1.msra.mxu0 0.0
          %586 = vmatprep.subr.mxu0 0.0
          %587 = vmatpush1.msra.mxu0 0.0
          %588 = vmatprep.subr.mxu0 0.0
          %589 = vmatpush1.msra.mxu0 0.0
          %590 = vmatprep.subr.mxu0 0.0
          %591 = vmatpush1.msra.mxu0 0.0
          %592 = vmatprep.subr.mxu0 0.0
          %593 = vmatpush1.msra.mxu0 0.0
          %594 = vmatprep.subr.mxu0 0.0
          %595 = vmatpush1.msra.mxu0 0.0
          %596 = vmatprep.subr.mxu0 0.0
          %597 = vmatpush1.msra.mxu0 0.0
          %598 = vmatprep.subr.mxu0 0.0
          %599 = vmatpush1.msra.mxu0 0.0
          %600 = vmatprep.subr.mxu0 0.0
          %601 = vmatpush1.msra.mxu0 0.0
          %602 = vmatprep.subr.mxu0 0.0
          %603 = vmatpush1.msra.mxu0 0.0
          %604 = vmatprep.subr.mxu0 0.0
          %605 = vmatpush1.msra.mxu0 0.0
          %606 = vmatprep.subr.mxu0 0.0
          %607 = vmatpush1.msra.mxu0 0.0
          %608 = vmatprep.subr.mxu0 0.0
          %609 = vmatpush1.msra.mxu0 0.0
          %610 = vmatprep.subr.mxu0 0.0
          %611 = vmatpush1.msra.mxu0 0.0
          %612 = vmatprep.subr.mxu0 0.0
          %613 = vmatpush1.msra.mxu0 0.0
          %614 = vmatprep.subr.mxu0 0.0
          %615 = vmatpush1.msra.mxu0 0.0
          %616 = vmatprep.subr.mxu0 0.0
          %617 = vmatpush1.msra.mxu0 0.0
          %618 = vmatprep.subr.mxu0 0.0
          %619 = vmatpush1.msra.mxu0 0.0
          %620 = vmatprep.subr.mxu0 0.0
          %621 = vmatpush1.msra.mxu0 0.0
          %622 = vmatprep.subr.mxu0 0.0
          %623 = vmatpush1.msra.mxu0 0.0
          %624 = vmatprep.subr.mxu0 0.0
          %625 = vmatpush1.msra.mxu0 0.0
          %626 = vmatprep.subr.mxu0 0.0
          %627 = vmatpush1.msra.mxu0 0.0
          %628 = vmatprep.subr.mxu0 0.0
          %629 = vmatpush1.msra.mxu0 0.0
          %630 = vmatprep.mubr.f32.mxu0 0.0
          %v631 = vand.u32 %v253, 4294901760
          %v632 = vsub.f32 %v253, %v631
          %633 = vmatmul.mubr.f32.gmra.mrb[0].mxu0 %v632
          %v634 = vpop.f32.mrb[0].mxu0
          %v635 = vadd.f32 %v509, %v634
          %v636 = vpop.f32.mrb[0].mxu0
          %v637 = vadd.f32 %v511, %v636
          %638 = vmatprep.mubr.f32.mxu0 0.0
          %v639 = vand.u32 %v256, 4294901760
          %v640 = vsub.f32 %v256, %v639
          %641 = vmatmul.mubr.f32.gmra.mrb[0].mxu0 %v640
          %v642 = vpop.f32.mrb[0].mxu0
          %v643 = vadd.f32 %v516, %v642
          %v644 = vpop.f32.mrb[0].mxu0
          %v645 = vadd.f32 %v518, %v644
          %646 = vmatprep.mubr.f32.mxu0 0.0
          %v647 = vand.u32 %v259, 4294901760
          %v648 = vsub.f32 %v259, %v647
          %649 = vmatmul.mubr.f32.gmra.mrb[0].mxu0 %v648
          %v650 = vpop.f32.mrb[0].mxu0
          %v651 = vadd.f32 %v523, %v650
          %v652 = vpop.f32.mrb[0].mxu0
          %v653 = vadd.f32 %v525, %v652
          %654 = vmatprep.mubr.f32.mxu0 0.0
          %v655 = vand.u32 %v262, 4294901760
          %v656 = vsub.f32 %v262, %v655
          %657 = vmatmul.mubr.f32.gmra.mrb[0].mxu0 %v656
          %v658 = vpop.f32.mrb[0].mxu0
          %v659 = vadd.f32 %v530, %v658
          %v660 = vpop.f32.mrb[0].mxu0
          %v661 = vadd.f32 %v532, %v660
          %662 = vmatprep.mubr.f32.mxu0 0.0
          %v663 = vand.u32 %v265, 4294901760
          %v664 = vsub.f32 %v265, %v663
          %665 = vmatmul.mubr.f32.gmra.mrb[0].mxu0 %v664
          %v666 = vpop.f32.mrb[0].mxu0
          %v667 = vadd.f32 %v537, %v666
          %v668 = vpop.f32.mrb[0].mxu0
          %v669 = vadd.f32 %v539, %v668
          %670 = vmatprep.mubr.f32.mxu0 0.0
          %v671 = vand.u32 %v268, 4294901760
          %v672 = vsub.f32 %v268, %v671
          %673 = vmatmul.mubr.f32.gmra.mrb[0].mxu0 %v672
          %v674 = vpop.f32.mrb[0].mxu0
          %v675 = vadd.f32 %v544, %v674
          %v676 = vpop.f32.mrb[0].mxu0
          %v677 = vadd.f32 %v546, %v676
          %678 = vmatprep.mubr.f32.mxu0 0.0
          %v679 = vand.u32 %v271, 4294901760
          %v680 = vsub.f32 %v271, %v679
          %681 = vmatmul.mubr.f32.gmra.mrb[0].mxu0 %v680
          %v682 = vpop.f32.mrb[0].mxu0
          %v683 = vadd.f32 %v551, %v682
          %v684 = vpop.f32.mrb[0].mxu0
          %v685 = vadd.f32 %v553, %v684
          %686 = vmatprep.mubr.f32.mxu0 0.0
          %v687 = vand.u32 %v274, 4294901760
          %v688 = vsub.f32 %v274, %v687
          %689 = vmatmul.mubr.f32.gmra.mrb[0].mxu0 %v688
          %v690 = vpop.f32.mrb[0].mxu0
          %v691 = vadd.f32 %v558, %v690
          %v692 = vpop.f32.mrb[0].mxu0
          %v693 = vadd.f32 %v560, %v692
          %694 = vdwg.mxu0
          %v695 = vand.u32 %v250, 4294901760
          %696 = vmatprep.subr.mxu0 %v695
          %v697 = vand.u32 %v249, 4294901760
          %698 = vmatpush1.msra.mxu0 %v697
          %699 = vmatprep.subr.mxu0 0.0
          %700 = vmatpush1.msra.mxu0 0.0
          %701 = vmatprep.subr.mxu0 0.0
          %702 = vmatpush1.msra.mxu0 0.0
          %703 = vmatprep.subr.mxu0 0.0
          %704 = vmatpush1.msra.mxu0 0.0
          %705 = vmatprep.subr.mxu0 0.0
          %706 = vmatpush1.msra.mxu0 0.0
          %707 = vmatprep.subr.mxu0 0.0
          %708 = vmatpush1.msra.mxu0 0.0
          %709 = vmatprep.subr.mxu0 0.0
          %710 = vmatpush1.msra.mxu0 0.0
          %711 = vmatprep.subr.mxu0 0.0
          %712 = vmatpush1.msra.mxu0 0.0
          %713 = vmatprep.subr.mxu0 0.0
          %714 = vmatpush1.msra.mxu0 0.0
          %715 = vmatprep.subr.mxu0 0.0
          %716 = vmatpush1.msra.mxu0 0.0
          %717 = vmatprep.subr.mxu0 0.0
          %718 = vmatpush1.msra.mxu0 0.0
          %719 = vmatprep.subr.mxu0 0.0
          %720 = vmatpush1.msra.mxu0 0.0
          %721 = vmatprep.subr.mxu0 0.0
          %722 = vmatpush1.msra.mxu0 0.0
          %723 = vmatprep.subr.mxu0 0.0
          %724 = vmatpush1.msra.mxu0 0.0
          %725 = vmatprep.subr.mxu0 0.0
          %726 = vmatpush1.msra.mxu0 0.0
          %727 = vmatprep.subr.mxu0 0.0
          %728 = vmatpush1.msra.mxu0 0.0
          %729 = vmatprep.subr.mxu0 0.0
          %730 = vmatpush1.msra.mxu0 0.0
          %731 = vmatprep.subr.mxu0 0.0
          %732 = vmatpush1.msra.mxu0 0.0
          %733 = vmatprep.subr.mxu0 0.0
          %734 = vmatpush1.msra.mxu0 0.0
          %735 = vmatprep.subr.mxu0 0.0
          %736 = vmatpush1.msra.mxu0 0.0
          %737 = vmatprep.subr.mxu0 0.0
          %738 = vmatpush1.msra.mxu0 0.0
          %739 = vmatprep.subr.mxu0 0.0
          %740 = vmatpush1.msra.mxu0 0.0
          %741 = vmatprep.subr.mxu0 0.0
          %742 = vmatpush1.msra.mxu0 0.0
          %743 = vmatprep.subr.mxu0 0.0
          %744 = vmatpush1.msra.mxu0 0.0
          %745 = vmatprep.subr.mxu0 0.0
          %746 = vmatpush1.msra.mxu0 0.0
          %747 = vmatprep.subr.mxu0 0.0
          %748 = vmatpush1.msra.mxu0 0.0
          %749 = vmatprep.subr.mxu0 0.0
          %750 = vmatpush1.msra.mxu0 0.0
          %751 = vmatprep.subr.mxu0 0.0
          %752 = vmatpush1.msra.mxu0 0.0
          %753 = vmatprep.subr.mxu0 0.0
          %754 = vmatpush1.msra.mxu0 0.0
          %755 = vmatprep.subr.mxu0 0.0
          %756 = vmatpush1.msra.mxu0 0.0
          %757 = vmatprep.subr.mxu0 0.0
          %758 = vmatpush1.msra.mxu0 0.0
          %759 = vmatprep.subr.mxu0 0.0
          %760 = vmatpush1.msra.mxu0 0.0
          %761 = vmatprep.mubr.f32.mxu0 0.0
          %v762 = vand.u32 %v253, 4294901760
          %v763 = vsub.f32 %v253, %v762
          %v764 = vand.u32 %v763, 4294901760
          %765 = vmatmul.mubr.f32.gmra.mrb[0].mxu0 %v764
          %v766 = vpop.f32.mrb[0].mxu0
          %v767 = vadd.f32 %v635, %v766
          %v768 = vpop.f32.mrb[0].mxu0
          %v769 = vadd.f32 %v637, %v768
          %770 = vmatprep.mubr.f32.mxu0 0.0
          %v771 = vand.u32 %v256, 4294901760
          %v772 = vsub.f32 %v256, %v771
          %v773 = vand.u32 %v772, 4294901760
          %774 = vmatmul.mubr.f32.gmra.mrb[0].mxu0 %v773
          %v775 = vpop.f32.mrb[0].mxu0
          %v776 = vadd.f32 %v643, %v775
          %v777 = vpop.f32.mrb[0].mxu0
          %v778 = vadd.f32 %v645, %v777
          %779 = vmatprep.mubr.f32.mxu0 0.0
          %v780 = vand.u32 %v259, 4294901760
          %v781 = vsub.f32 %v259, %v780
          %v782 = vand.u32 %v781, 4294901760
          %783 = vmatmul.mubr.f32.gmra.mrb[0].mxu0 %v782
          %v784 = vpop.f32.mrb[0].mxu0
          %v785 = vadd.f32 %v651, %v784
          %v786 = vpop.f32.mrb[0].mxu0
          %v787 = vadd.f32 %v653, %v786
          %788 = vmatprep.mubr.f32.mxu0 0.0
          %v789 = vand.u32 %v262, 4294901760
          %v790 = vsub.f32 %v262, %v789
          %v791 = vand.u32 %v790, 4294901760
          %792 = vmatmul.mubr.f32.gmra.mrb[0].mxu0 %v791
          %v793 = vpop.f32.mrb[0].mxu0
          %v794 = vadd.f32 %v659, %v793
          %v795 = vpop.f32.mrb[0].mxu0
          %v796 = vadd.f32 %v661, %v795
          %797 = vmatprep.mubr.f32.mxu0 0.0
          %v798 = vand.u32 %v265, 4294901760
          %v799 = vsub.f32 %v265, %v798
          %v800 = vand.u32 %v799, 4294901760
          %801 = vmatmul.mubr.f32.gmra.mrb[0].mxu0 %v800
          %v802 = vpop.f32.mrb[0].mxu0
          %v803 = vadd.f32 %v667, %v802
          %v804 = vpop.f32.mrb[0].mxu0
          %v805 = vadd.f32 %v669, %v804
          %806 = vmatprep.mubr.f32.mxu0 0.0
          %v807 = vand.u32 %v268, 4294901760
          %v808 = vsub.f32 %v268, %v807
          %v809 = vand.u32 %v808, 4294901760
          %810 = vmatmul.mubr.f32.gmra.mrb[0].mxu0 %v809
          %v811 = vpop.f32.mrb[0].mxu0
          %v812 = vadd.f32 %v675, %v811
          %v813 = vpop.f32.mrb[0].mxu0
          %v814 = vadd.f32 %v677, %v813
          %815 = vmatprep.mubr.f32.mxu0 0.0
          %v816 = vand.u32 %v271, 4294901760
          %v817 = vsub.f32 %v271, %v816
          %v818 = vand.u32 %v817, 4294901760
          %819 = vmatmul.mubr.f32.gmra.mrb[0].mxu0 %v818
          %v820 = vpop.f32.mrb[0].mxu0
          %v821 = vadd.f32 %v683, %v820
          %v822 = vpop.f32.mrb[0].mxu0
          %v823 = vadd.f32 %v685, %v822
          %824 = vmatprep.mubr.f32.mxu0 0.0
          %v825 = vand.u32 %v274, 4294901760
          %v826 = vsub.f32 %v274, %v825
          %v827 = vand.u32 %v826, 4294901760
          %828 = vmatmul.mubr.f32.gmra.mrb[0].mxu0 %v827
          %v829 = vpop.f32.mrb[0].mxu0
          %v830 = vadd.f32 %v691, %v829
          %v831 = vpop.f32.mrb[0].mxu0
          %v832 = vadd.f32 %v693, %v831
          %833 = vdwg.mxu0
          %v834 = vand.u32 %v250, 4294901760
          %v835 = vsub.f32 %v250, %v834
          %v836 = vand.u32 %v835, 4294901760
          %837 = vmatprep.subr.mxu0 %v836
          %v838 = vand.u32 %v249, 4294901760
          %v839 = vsub.f32 %v249, %v838
          %v840 = vand.u32 %v839, 4294901760
          %841 = vmatpush1.msra.mxu0 %v840
          %842 = vmatprep.subr.mxu0 0.0
          %843 = vmatpush1.msra.mxu0 0.0
          %844 = vmatprep.subr.mxu0 0.0
          %845 = vmatpush1.msra.mxu0 0.0
          %846 = vmatprep.subr.mxu0 0.0
          %847 = vmatpush1.msra.mxu0 0.0
          %848 = vmatprep.subr.mxu0 0.0
          %849 = vmatpush1.msra.mxu0 0.0
          %850 = vmatprep.subr.mxu0 0.0
          %851 = vmatpush1.msra.mxu0 0.0
          %852 = vmatprep.subr.mxu0 0.0
          %853 = vmatpush1.msra.mxu0 0.0
          %854 = vmatprep.subr.mxu0 0.0
          %855 = vmatpush1.msra.mxu0 0.0
          %856 = vmatprep.subr.mxu0 0.0
          %857 = vmatpush1.msra.mxu0 0.0
          %858 = vmatprep.subr.mxu0 0.0
          %859 = vmatpush1.msra.mxu0 0.0
          %860 = vmatprep.subr.mxu0 0.0
          %861 = vmatpush1.msra.mxu0 0.0
          %862 = vmatprep.subr.mxu0 0.0
          %863 = vmatpush1.msra.mxu0 0.0
          %864 = vmatprep.subr.mxu0 0.0
          %865 = vmatpush1.msra.mxu0 0.0
          %866 = vmatprep.subr.mxu0 0.0
          %867 = vmatpush1.msra.mxu0 0.0
          %868 = vmatprep.subr.mxu0 0.0
          %869 = vmatpush1.msra.mxu0 0.0
          %870 = vmatprep.subr.mxu0 0.0
          %871 = vmatpush1.msra.mxu0 0.0
          %872 = vmatprep.subr.mxu0 0.0
          %873 = vmatpush1.msra.mxu0 0.0
          %874 = vmatprep.subr.mxu0 0.0
          %875 = vmatpush1.msra.mxu0 0.0
          %876 = vmatprep.subr.mxu0 0.0
          %877 = vmatpush1.msra.mxu0 0.0
          %878 = vmatprep.subr.mxu0 0.0
          %879 = vmatpush1.msra.mxu0 0.0
          %880 = vmatprep.subr.mxu0 0.0
          %881 = vmatpush1.msra.mxu0 0.0
          %882 = vmatprep.subr.mxu0 0.0
          %883 = vmatpush1.msra.mxu0 0.0
          %884 = vmatprep.subr.mxu0 0.0
          %885 = vmatpush1.msra.mxu0 0.0
          %886 = vmatprep.subr.mxu0 0.0
          %887 = vmatpush1.msra.mxu0 0.0
          %888 = vmatprep.subr.mxu0 0.0
          %889 = vmatpush1.msra.mxu0 0.0
          %890 = vmatprep.subr.mxu0 0.0
          %891 = vmatpush1.msra.mxu0 0.0
          %892 = vmatprep.subr.mxu0 0.0
          %893 = vmatpush1.msra.mxu0 0.0
          %894 = vmatprep.subr.mxu0 0.0
          %895 = vmatpush1.msra.mxu0 0.0
          %896 = vmatprep.subr.mxu0 0.0
          %897 = vmatpush1.msra.mxu0 0.0
          %898 = vmatprep.subr.mxu0 0.0
          %899 = vmatpush1.msra.mxu0 0.0
          %900 = vmatprep.subr.mxu0 0.0
          %901 = vmatpush1.msra.mxu0 0.0
          %902 = vmatprep.subr.mxu0 0.0
          %903 = vmatpush1.msra.mxu0 0.0
          %904 = vmatprep.mubr.f32.mxu0 0.0
          %v905 = vand.u32 %v253, 4294901760
          %906 = vmatmul.mubr.f32.gmra.mrb[0].mxu0 %v905
          %v907 = vpop.f32.mrb[0].mxu0
          %v908 = vadd.f32 %v767, %v907
          %v909 = vpop.f32.mrb[0].mxu0
          %v910 = vadd.f32 %v769, %v909
          %911 = vmatprep.mubr.f32.mxu0 0.0
          %v912 = vand.u32 %v256, 4294901760
          %913 = vmatmul.mubr.f32.gmra.mrb[0].mxu0 %v912
          %v914 = vpop.f32.mrb[0].mxu0
          %v915 = vadd.f32 %v776, %v914
          %v916 = vpop.f32.mrb[0].mxu0
          %v917 = vadd.f32 %v778, %v916
          %918 = vmatprep.mubr.f32.mxu0 0.0
          %v919 = vand.u32 %v259, 4294901760
          %920 = vmatmul.mubr.f32.gmra.mrb[0].mxu0 %v919
          %v921 = vpop.f32.mrb[0].mxu0
          %v922 = vadd.f32 %v785, %v921
          %v923 = vpop.f32.mrb[0].mxu0
          %v924 = vadd.f32 %v787, %v923
          %925 = vmatprep.mubr.f32.mxu0 0.0
          %v926 = vand.u32 %v262, 4294901760
          %927 = vmatmul.mubr.f32.gmra.mrb[0].mxu0 %v926
          %v928 = vpop.f32.mrb[0].mxu0
          %v929 = vadd.f32 %v794, %v928
          %v930 = vpop.f32.mrb[0].mxu0
          %v931 = vadd.f32 %v796, %v930
          %932 = vmatprep.mubr.f32.mxu0 0.0
          %v933 = vand.u32 %v265, 4294901760
          %934 = vmatmul.mubr.f32.gmra.mrb[0].mxu0 %v933
          %v935 = vpop.f32.mrb[0].mxu0
          %v936 = vadd.f32 %v803, %v935
          %v937 = vpop.f32.mrb[0].mxu0
          %v938 = vadd.f32 %v805, %v937
          %939 = vmatprep.mubr.f32.mxu0 0.0
          %v940 = vand.u32 %v268, 4294901760
          %941 = vmatmul.mubr.f32.gmra.mrb[0].mxu0 %v940
          %v942 = vpop.f32.mrb[0].mxu0
          %v943 = vadd.f32 %v812, %v942
          %v944 = vpop.f32.mrb[0].mxu0
          %v945 = vadd.f32 %v814, %v944
          %946 = vmatprep.mubr.f32.mxu0 0.0
          %v947 = vand.u32 %v271, 4294901760
          %948 = vmatmul.mubr.f32.gmra.mrb[0].mxu0 %v947
          %v949 = vpop.f32.mrb[0].mxu0
          %v950 = vadd.f32 %v821, %v949
          %v951 = vpop.f32.mrb[0].mxu0
          %v952 = vadd.f32 %v823, %v951
          %953 = vmatprep.mubr.f32.mxu0 0.0
          %v954 = vand.u32 %v274, 4294901760
          %955 = vmatmul.mubr.f32.gmra.mrb[0].mxu0 %v954
          %v956 = vpop.f32.mrb[0].mxu0
          %v957 = vadd.f32 %v830, %v956
          %v958 = vpop.f32.mrb[0].mxu0
          %v959 = vadd.f32 %v832, %v958
          %960 = vdwg.mxu0
          %v961 = vand.u32 %v250, 4294901760
          %962 = vmatprep.subr.mxu0 %v961
          %v963 = vand.u32 %v249, 4294901760
          %964 = vmatpush1.msra.mxu0 %v963
          %965 = vmatprep.subr.mxu0 0.0
          %966 = vmatpush1.msra.mxu0 0.0
          %967 = vmatprep.subr.mxu0 0.0
          %968 = vmatpush1.msra.mxu0 0.0
          %969 = vmatprep.subr.mxu0 0.0
          %970 = vmatpush1.msra.mxu0 0.0
          %971 = vmatprep.subr.mxu0 0.0
          %972 = vmatpush1.msra.mxu0 0.0
          %973 = vmatprep.subr.mxu0 0.0
          %974 = vmatpush1.msra.mxu0 0.0
          %975 = vmatprep.subr.mxu0 0.0
          %976 = vmatpush1.msra.mxu0 0.0
          %977 = vmatprep.subr.mxu0 0.0
          %978 = vmatpush1.msra.mxu0 0.0
          %979 = vmatprep.subr.mxu0 0.0
          %980 = vmatpush1.msra.mxu0 0.0
          %981 = vmatprep.subr.mxu0 0.0
          %982 = vmatpush1.msra.mxu0 0.0
          %983 = vmatprep.subr.mxu0 0.0
          %984 = vmatpush1.msra.mxu0 0.0
          %985 = vmatprep.subr.mxu0 0.0
          %986 = vmatpush1.msra.mxu0 0.0
          %987 = vmatprep.subr.mxu0 0.0
          %988 = vmatpush1.msra.mxu0 0.0
          %989 = vmatprep.subr.mxu0 0.0
          %990 = vmatpush1.msra.mxu0 0.0
          %991 = vmatprep.subr.mxu0 0.0
          %992 = vmatpush1.msra.mxu0 0.0
          %993 = vmatprep.subr.mxu0 0.0
          %994 = vmatpush1.msra.mxu0 0.0
          %995 = vmatprep.subr.mxu0 0.0
          %996 = vmatpush1.msra.mxu0 0.0
          %997 = vmatprep.subr.mxu0 0.0
          %998 = vmatpush1.msra.mxu0 0.0
          %999 = vmatprep.subr.mxu0 0.0
          %1000 = vmatpush1.msra.mxu0 0.0
          %1001 = vmatprep.subr.mxu0 0.0
          %1002 = vmatpush1.msra.mxu0 0.0
          %1003 = vmatprep.subr.mxu0 0.0
          %1004 = vmatpush1.msra.mxu0 0.0
          %1005 = vmatprep.subr.mxu0 0.0
          %1006 = vmatpush1.msra.mxu0 0.0
          %1007 = vmatprep.subr.mxu0 0.0
          %1008 = vmatpush1.msra.mxu0 0.0
          %1009 = vmatprep.subr.mxu0 0.0
          %1010 = vmatpush1.msra.mxu0 0.0
          %1011 = vmatprep.subr.mxu0 0.0
          %1012 = vmatpush1.msra.mxu0 0.0
          %1013 = vmatprep.subr.mxu0 0.0
          %1014 = vmatpush1.msra.mxu0 0.0
          %1015 = vmatprep.subr.mxu0 0.0
          %1016 = vmatpush1.msra.mxu0 0.0
          %1017 = vmatprep.subr.mxu0 0.0
          %1018 = vmatpush1.msra.mxu0 0.0
          %1019 = vmatprep.subr.mxu0 0.0
          %1020 = vmatpush1.msra.mxu0 0.0
          %1021 = vmatprep.subr.mxu0 0.0
          %1022 = vmatpush1.msra.mxu0 0.0
          %1023 = vmatprep.subr.mxu0 0.0
          %1024 = vmatpush1.msra.mxu0 0.0
          %1025 = vmatprep.subr.mxu0 0.0
          %1026 = vmatpush1.msra.mxu0 0.0
          %1027 = vmatprep.mubr.f32.mxu0 0.0
          %v1028 = vand.u32 %v253, 4294901760
          %1029 = vmatmul.mubr.f32.gmra.mrb[0].mxu0 %v1028
          %v1030 = vpop.f32.mrb[0].mxu0
          %v1031 = vadd.f32 %v908, %v1030
          %v1032 = vpop.f32.mrb[0].mxu0
          %v1033 = vadd.f32 %v910, %v1032
          %1034 = vmatprep.mubr.f32.mxu0 0.0
          %v1035 = vand.u32 %v256, 4294901760
          %1036 = vmatmul.mubr.f32.gmra.mrb[0].mxu0 %v1035
          %v1037 = vpop.f32.mrb[0].mxu0
          %v1038 = vadd.f32 %v915, %v1037
          %v1039 = vpop.f32.mrb[0].mxu0
          %v1040 = vadd.f32 %v917, %v1039
          %1041 = vmatprep.mubr.f32.mxu0 0.0
          %v1042 = vand.u32 %v259, 4294901760
          %1043 = vmatmul.mubr.f32.gmra.mrb[0].mxu0 %v1042
          %v1044 = vpop.f32.mrb[0].mxu0
          %v1045 = vadd.f32 %v922, %v1044
          %v1046 = vpop.f32.mrb[0].mxu0
          %v1047 = vadd.f32 %v924, %v1046
          %1048 = vmatprep.mubr.f32.mxu0 0.0
          %v1049 = vand.u32 %v262, 4294901760
          %1050 = vmatmul.mubr.f32.gmra.mrb[0].mxu0 %v1049
          %v1051 = vpop.f32.mrb[0].mxu0
          %v1052 = vadd.f32 %v929, %v1051
          %v1053 = vpop.f32.mrb[0].mxu0
          %v1054 = vadd.f32 %v931, %v1053
          %1055 = vmatprep.mubr.f32.mxu0 0.0
          %v1056 = vand.u32 %v265, 4294901760
          %1057 = vmatmul.mubr.f32.gmra.mrb[0].mxu0 %v1056
          %v1058 = vpop.f32.mrb[0].mxu0
          %v1059 = vadd.f32 %v936, %v1058
          %v1060 = vpop.f32.mrb[0].mxu0
          %v1061 = vadd.f32 %v938, %v1060
          %1062 = vmatprep.mubr.f32.mxu0 0.0
          %v1063 = vand.u32 %v268, 4294901760
          %1064 = vmatmul.mubr.f32.gmra.mrb[0].mxu0 %v1063
          %v1065 = vpop.f32.mrb[0].mxu0
          %v1066 = vadd.f32 %v943, %v1065
          %v1067 = vpop.f32.mrb[0].mxu0
          %v1068 = vadd.f32 %v945, %v1067
          %1069 = vmatprep.mubr.f32.mxu0 0.0
          %v1070 = vand.u32 %v271, 4294901760
          %1071 = vmatmul.mubr.f32.gmra.mrb[0].mxu0 %v1070
          %v1072 = vpop.f32.mrb[0].mxu0
          %v1073 = vadd.f32 %v950, %v1072
          %v1074 = vpop.f32.mrb[0].mxu0
          %v1075 = vadd.f32 %v952, %v1074
          %1076 = vmatprep.mubr.f32.mxu0 0.0
          %v1077 = vand.u32 %v274, 4294901760
          %1078 = vmatmul.mubr.f32.gmra.mrb[0].mxu0 %v1077
          %v1079 = vpop.f32.mrb[0].mxu0
          %v1080 = vadd.f32 %v957, %v1079
          %v1081 = vpop.f32.mrb[0].mxu0
          %v1082 = vadd.f32 %v959, %v1081
          %1083 = vdwg.mxu0
          %v1084 = vstv %s200
          %v1085 = vadd.s32 %v1084, 1
          %v1086 = vadd.s32 %v1084, 2
          %v1087 = vadd.s32 %v1084, 3
          %v1088 = vadd.s32 %v1084, 4
          %v1089 = vadd.s32 %v1084, 5
          %v1090 = vadd.s32 %v1084, 6
          %v1091 = vadd.s32 %v1084, 7
          %vm1092 = vcmp.lt.s32.totalorder %v1084, 8
          %vm1093 = vcmp.lt.s32.totalorder %v1085, 8
          %vm1094 = vcmp.lt.s32.totalorder %v1086, 8
          %vm1095 = vcmp.lt.s32.totalorder %v1087, 8
          %vm1096 = vcmp.lt.s32.totalorder %v1088, 8
          %vm1097 = vcmp.lt.s32.totalorder %v1089, 8
          %vm1098 = vcmp.lt.s32.totalorder %v1090, 8
          %vm1099 = vcmp.lt.s32.totalorder %v1091, 8
          %v1100 = vld [vmem:[%s2] sm:$0xff]
          %v1101 = vld [vmem:[%s2 + $0x8] sm:$0xff]
          %v1102 = vsel %vm1092, 1, 0
          %v1103 = vsel %vm1093, 1, 0
          %v1104 = vsel %vm1094, 1, 0
          %v1105 = vsel %vm1095, 1, 0
          %v1106 = vsel %vm1096, 1, 0
          %v1107 = vsel %vm1097, 1, 0
          %v1108 = vsel %vm1098, 1, 0
          %v1109 = vsel %vm1099, 1, 0
          %vm1110 = vcmp.eq.s32.totalorder %v1102, 1
          %vm1111 = vcmp.eq.s32.totalorder %v1103, 1
          %vm1112 = vcmp.eq.s32.totalorder %v1104, 1
          %vm1113 = vcmp.eq.s32.totalorder %v1105, 1
          %vm1114 = vcmp.eq.s32.totalorder %v1106, 1
          %vm1115 = vcmp.eq.s32.totalorder %v1107, 1
          %vm1116 = vcmp.eq.s32.totalorder %v1108, 1
          %vm1117 = vcmp.eq.s32.totalorder %v1109, 1
          %v1118 = vsel %vm1110, %v1100, 0.0
          %v1119 = vsel %vm1110, %v1101, 0.0
          %v1120 = vsel %vm1111, %v1100, 0.0
          %v1121 = vsel %vm1111, %v1101, 0.0
          %v1122 = vsel %vm1112, %v1100, 0.0
          %v1123 = vsel %vm1112, %v1101, 0.0
          %v1124 = vsel %vm1113, %v1100, 0.0
          %v1125 = vsel %vm1113, %v1101, 0.0
          %v1126 = vsel %vm1114, %v1100, 0.0
          %v1127 = vsel %vm1114, %v1101, 0.0
          %v1128 = vsel %vm1115, %v1100, 0.0
          %v1129 = vsel %vm1115, %v1101, 0.0
          %v1130 = vsel %vm1116, %v1100, 0.0
          %v1131 = vsel %vm1116, %v1101, 0.0
          %v1132 = vsel %vm1117, %v1100, 0.0
          %v1133 = vsel %vm1117, %v1101, 0.0
          %v1134 = vadd.f32 %v1031, %v1118
          %v1135 = vadd.f32 %v1033, %v1119
          %v1136 = vadd.f32 %v1038, %v1120
          %v1137 = vadd.f32 %v1040, %v1121
          %v1138 = vadd.f32 %v1045, %v1122
          %v1139 = vadd.f32 %v1047, %v1123
          %v1140 = vadd.f32 %v1052, %v1124
          %v1141 = vadd.f32 %v1054, %v1125
          %v1142 = vadd.f32 %v1059, %v1126
          %v1143 = vadd.f32 %v1061, %v1127
          %v1144 = vadd.f32 %v1066, %v1128
          %v1145 = vadd.f32 %v1068, %v1129
          %v1146 = vadd.f32 %v1073, %v1130
          %v1147 = vadd.f32 %v1075, %v1131
          %v1148 = vadd.f32 %v1080, %v1132
          %v1149 = vadd.f32 %v1082, %v1133
          %1150 = vst [vmem:[%s188] sm:$0xff] %v1134
          %1151 = vst [vmem:[%s188 + $0x8] sm:$0xff] %v1135
          %1152 = vst [vmem:[%s188 + $0x20] sm:$0xff] %v1136
          %1153 = vst [vmem:[%s188 + $0x28] sm:$0xff] %v1137
          %1154 = vst [vmem:[%s188 + $0x40] sm:$0xff] %v1138
          %1155 = vst [vmem:[%s188 + $0x48] sm:$0xff] %v1139
          %1156 = vst [vmem:[%s188 + $0x60] sm:$0xff] %v1140
          %1157 = vst [vmem:[%s188 + $0x68] sm:$0xff] %v1141
          %1158 = vst [vmem:[%s188 + $0x80] sm:$0xff] %v1142
          %1159 = vst [vmem:[%s188 + $0x88] sm:$0xff] %v1143
          %1160 = vst [vmem:[%s188 + $0xa0] sm:$0xff] %v1144
          %1161 = vst [vmem:[%s188 + $0xa8] sm:$0xff] %v1145
          %1162 = vst [vmem:[%s188 + $0xc0] sm:$0xff] %v1146
          %1163 = vst [vmem:[%s188 + $0xc8] sm:$0xff] %v1147
          %1164 = vst [vmem:[%s188 + $0xe0] sm:$0xff] %v1148
          %1165 = vst [vmem:[%s188 + $0xe8] sm:$0xff] %v1149
          %1166 = vst [vmem:[%s188 + $0x10] sm:$0xff] 0.0
          %1167 = vst [vmem:[%s188 + $0x18] sm:$0xff] 0.0
          %1168 = vst [vmem:[%s188 + $0x30] sm:$0xff] 0.0
          %1169 = vst [vmem:[%s188 + $0x38] sm:$0xff] 0.0
          %1170 = vst [vmem:[%s188 + $0x50] sm:$0xff] 0.0
          %1171 = vst [vmem:[%s188 + $0x58] sm:$0xff] 0.0
          %1172 = vst [vmem:[%s188 + $0x70] sm:$0xff] 0.0
          %1173 = vst [vmem:[%s188 + $0x78] sm:$0xff] 0.0
          %1174 = vst [vmem:[%s188 + $0x90] sm:$0xff] 0.0
          %1175 = vst [vmem:[%s188 + $0x98] sm:$0xff] 0.0
          %1176 = vst [vmem:[%s188 + $0xb0] sm:$0xff] 0.0
          %1177 = vst [vmem:[%s188 + $0xb8] sm:$0xff] 0.0
          %1178 = vst [vmem:[%s188 + $0xd0] sm:$0xff] 0.0
          %1179 = vst [vmem:[%s188 + $0xd8] sm:$0xff] 0.0
          %1180 = vst [vmem:[%s188 + $0xf0] sm:$0xff] 0.0
          %1181 = vst [vmem:[%s188 + $0xf8] sm:$0xff] 0.0
        $region40: #{tpu_custom_call.1} parent=31 // pred_fallthru
          _
        %s1182 = sand.u32 %s109, 1
        %s1183 = scalar_lea.sflag [#allocation3], %s1182
        %s1184 = sand.u32 %s109, 1
        %s1185 = smul.addr %s1184, 256
        %s1186 = scalar_lea.vmem [#allocation2], %s1185
        // Predicated region
        $region41: #{tpu_custom_call.1} parent=31 // pred_check
          %p1187 = pneg %p119
        $region42: #{tpu_custom_call.1} parent=31 // pred_check_branch
          %1189 = sbr.rel (%p1187) target = $region44
        $region43: #{tpu_custom_call.1} parent=31 // pred_region
          %s1190 = smul.u32 8, %s22
          %s1192 = ssub.s32 4096, 4096
          %1193 = vsyncadd %s1183, %s1192
          %s1194 = smul.addr %s1190, 4
          %s1195 = smul.addr %s21, 64
          %s1196 = sadd.s32 %s1194, %s1195
          %s1197 = smul.addr %s1196, 128
          %s1198 = scalar_lea.hbm %s3, %s1197
          %s1199 = sshll.u32 %s1186, 4
          %s1200 = int_to_ptr.vmem [resolvable:$true] %s1199
          %1205 = dma.vmem_to_hbm [thread:$0]  %s1200, 4096, %s1198, %s1183, 256, 256, 16
        $region44: #{tpu_custom_call.1} parent=31 // pred_fallthru
          _
      $region32: #{tpu_custom_call.1} parent=5 // pred_fallthru
        _
      %p1206 = scmp.le.s32.totalorder 2, %s12
      // Predicated region
      $region45: #{tpu_custom_call.1} parent=5 // pred_check
        %p1207 = pneg %p1206
      $region46: #{tpu_custom_call.1} parent=5 // pred_check_branch
        %1209 = sbr.rel (%p1207) target = $region48
      $region47: #{tpu_custom_call.1} parent=5 // pred_region
        %s1210 = ssub.s32 %s12, 2
        // Predicated region
        $region49: #{tpu_custom_call.1} parent=47 // pred_check
          %p1211 = pneg %p125
        $region50: #{tpu_custom_call.1} parent=47 // pred_check_branch
          %1213 = sbr.rel (%p1211) target = $region52
        $region51: #{tpu_custom_call.1} parent=47 // pred_region
          %s1214 = sand.u32 %s110, 1
          %s1215 = scalar_lea.sflag [#allocation3], %s1214
          %s1216 = sand.u32 %s110, 1
          %s1217 = smul.addr %s1216, 256
          %s1218 = scalar_lea.vmem [#allocation2], %s1217
          %1219 = dma.done %s1215, 4096
        $region52: #{tpu_custom_call.1} parent=47 // pred_fallthru
          _
      $region48: #{tpu_custom_call.1} parent=5 // pred_fallthru
        _
    $region6: #{tpu_custom_call.1} parent=1 // loop_footer
      %s16 = sadd.s32 1, %s12
    $region7: #{tpu_custom_call.1} parent=1 // loop_footer_branch
      %11 = sbr.rel target = $region3
    $region8: #{tpu_custom_call.1} parent=1 // loop_exit
      _
    %1220 = vsyncpa [#allocation3], 1
    %s1221 = scalar_lea.sflag [#allocation3], 1
    %1222 = vsyncpa %s1221, 1

</llo_original>
